<compile_context>
chip_gen: v7x
topology: tpu7x:2x2x1
jax: 0.10.0
libtpu: 0.0.40
codegen_flags: <defaults>
</compile_context>

<pallas_src>
import functools

import jax
import jax.numpy as jnp
from jax import lax
from jax.experimental import pallas as pl
from jax.experimental.pallas import tpu as pltpu


# ---------------------------------------------------------------------------
# Kernel bodies (operate on flat, lane-dense rows: sublane = batch).
# ---------------------------------------------------------------------------
def _make_concat_kernel(channels, length, num_patches, patch_size):
    """Primary body: one lane-concat + one wide store per patch row."""
    C, L, N, P = channels, length, num_patches, patch_size

    if C == 1 or N == 1:
        # Degenerate cases: the patch relayout is the identity on the flat view.
        def identity_kernel(x_ref, o_ref):
            o_ref[...] = x_ref[...]
        return identity_kernel

    def kernel(x_ref, o_ref):
        # x_ref: (bt, C*L), o_ref: (bt, N*C*P); both lane-dense, batch on sublanes.
        def emit_row(n):
            row = jnp.concatenate(
                [x_ref[:, pl.ds(c * L + n * P, P)] for c in range(C)],
                axis=-1)                                      # (bt, C*P)
            o_ref[:, pl.ds(n * (C * P), C * P)] = row

        if N <= 128:
            for n in range(N):                 # static unroll for small N
                emit_row(n)
        else:
            def body(n, carry):                # bounded program size for big N
                emit_row(n)
                return carry
            lax.fori_loop(0, N, body, 0)

    return kernel


def _make_slice_store_kernel(channels, length, num_patches, patch_size):
    """Fallback body: per-(patch, channel) P-wide masked stores.

    Uses only lane-window loads/stores, which always lower; same flat
    lane-dense blocks as the primary so DMAs stay identical.
    """
    C, L, N, P = channels, length, num_patches, patch_size

    if C == 1 or N == 1:
        def identity_kernel(x_ref, o_ref):
            o_ref[...] = x_ref[...]
        return identity_kernel

    def kernel(x_ref, o_ref):
        def emit_row(n):
            for c in range(C):
                o_ref[:, pl.ds(n * (C * P) + c * P, P)] = (
                    x_ref[:, pl.ds(c * L + n * P, P)])

        if N <= 128:
            for n in range(N):
                emit_row(n)
        else:
            def body(n, carry):
                emit_row(n)
                return carry
            lax.fori_loop(0, N, body, 0)

    return kernel


# ---------------------------------------------------------------------------
# Generation-aware tiling heuristics.
# ---------------------------------------------------------------------------
def _vmem_capacity_bytes() -> int:
    try:
        cap = getattr(pltpu.get_tpu_info(), "vmem_capacity_bytes", None)
        if cap:
            return int(cap)
    except Exception:
        pass
    return 64 * 1024 * 1024  # conservative default (v7x per-TensorCore VMEM)


def _pick_batch_tile(batch, channels, length, patch_size, itemsize, vmem_cap):
    per_elem = channels * length * itemsize
    # in + out blocks, each double buffered => ~4 live blocks.  Target ~VMEM/8
    # per block (≈8 MiB on v7x, ≈16 MiB on v5e/v6e), leaving half of VMEM free
    # for Mosaic temporaries / spills.
    block_budget = max(1 << 20, min(vmem_cap // 8, 16 << 20))
    max_by_budget = max(1, block_budget // max(1, per_elem))
    # Keep the in-kernel (bt, C*P) row value (plus its C source slices) to a
    # fraction of the 64-vreg register file.
    row_cols = max(1, -(-(channels * patch_size) // 128))
    max_by_vregs = max(8, (32 * 8) // row_cols)
    cap = min(max_by_budget, max_by_vregs, 1024)

    # Valid tiles: second-minor dim of the (bt, flat) blocks must be a multiple
    # of 8 or the full batch ((8,128) rule) — never a degenerate bt.
    candidates = [d for d in range(1, batch + 1)
                  if batch % d == 0 and (d % 8 == 0 or d == batch)]
    feasible = [d for d in candidates if d <= cap] or [min(candidates)]

    steps = lambda d: batch // d
    # Prefer an even step count (v7x megacore) in the 4..16 range so the
    # BlockSpec pipeline has enough steps to hide the DMAs.
    for good in ((lambda d: steps(d) % 2 == 0 and 4 <= steps(d) <= 16),
                 (lambda d: steps(d) % 2 == 0),
                 (lambda d: steps(d) >= 2),
                 (lambda d: True)):
        sel = [d for d in feasible if good(d)]
        if sel:
            return max(sel)
    return max(feasible)


# ---------------------------------------------------------------------------
# pallas_call builder (cached once per configuration).
# ---------------------------------------------------------------------------
@functools.lru_cache(maxsize=None)
def _build_relayout_fn(batch, channels, length, patch_size, dtype_name):
    dtype = jnp.dtype(dtype_name)
    itemsize = dtype.itemsize
    num_patches = length // patch_size
    flat = channels * length  # == num_patches * channels * patch_size

    vmem_cap = _vmem_capacity_bytes()
    bt = _pick_batch_tile(batch, channels, length, patch_size, itemsize, vmem_cap)
    grid = (batch // bt,)

    block_bytes = bt * flat * itemsize
    needed = 4 * block_bytes + (4 << 20)          # double-buffered in + out
    vmem_limit = int(min(max(needed, 32 << 20),
                         max(vmem_cap - (2 << 20), 16 << 20)))

    def to_call(body):
        call = pl.pallas_call(
            body,
            out_shape=jax.ShapeDtypeStruct((batch, flat), dtype),
            grid_spec=pltpu.PrefetchScalarGridSpec(
                num_scalar_prefetch=0,
                grid=grid,
                in_specs=[pl.BlockSpec((bt, flat), lambda b: (b, 0))],
                out_specs=pl.BlockSpec((bt, flat), lambda b: (b, 0)),
            ),
            compiler_params=pltpu.CompilerParams(
                dimension_semantics=("parallel",),
                vmem_limit_bytes=vmem_limit,
            ),
            cost_estimate=pl.CostEstimate(
                flops=0,
                transcendentals=0,
                bytes_accessed=2 * batch * flat * itemsize,
            ),
        )
        return jax.jit(call)

    primary = to_call(
        _make_concat_kernel(channels, length, num_patches, patch_size))
    arg = jax.ShapeDtypeStruct((batch, flat), dtype)
    try:
        # One-time capability probe (AOT compile) instead of the old per-call
        # block_until_ready + broad try/except: decided once per configuration,
        # cached, and dispatch afterwards is unconditional (jit-safe).
        primary.lower(arg).compile()
        return primary
    except Exception:
        # Mosaic versions without unaligned lane-dim concatenate support.
        return to_call(
            _make_slice_store_kernel(channels, length, num_patches, patch_size))


# ---------------------------------------------------------------------------
# Public entry point.
# ---------------------------------------------------------------------------
def patch_extractor(x: jax.Array, patch_size: int) -> jax.Array:
    """Pallas implementation of PatchExtractor.forward.

    x: (B, C, L), L must be divisible by patch_size.
    returns: (B, L // patch_size, C * patch_size)
    """
    batch, channels, length = x.shape
    assert length % patch_size == 0, (
        f"Input signal length ({length}) must be divisible by "
        f"patch size ({patch_size})")
    num_patches = length // patch_size

    fn = _build_relayout_fn(batch, channels, length, patch_size,
                            jnp.dtype(x.dtype).name)
    # Free, contiguous reshapes on both sides: the kernel sees flat lane-dense
    # rows (batch on sublanes) so both DMAs are long and contiguous and the
    # element order matches torch's unfold+permute+view exactly.
    out_flat = fn(x.reshape(batch, channels * length))
    return out_flat.reshape(batch, num_patches, channels * patch_size)


def patch_extractor_ref(x: jax.Array, patch_size: int) -> jax.Array:
    """Pure-JAX reference mirroring the torch unfold/permute/view."""
    b, c, l = x.shape
    n = l // patch_size
    return (x.reshape(b, c, n, patch_size)
             .transpose(0, 2, 1, 3)
             .reshape(b, n, c * patch_size))


if __name__ == "__main__":
    key = jax.random.PRNGKey(0)
    k1, k2 = jax.random.split(key)

    patch_size = 10  # module default

    # Small single-block case (bt == batch).
    x1 = jax.random.normal(k1, (2, 4, 40), dtype=jnp.float32)
    out1 = jax.block_until_ready(patch_extractor(x1, patch_size))
    ref1 = patch_extractor_ref(x1, patch_size)
    assert out1.shape == (2, 4, 40)
    assert out1.dtype == x1.dtype
    assert jnp.array_equal(out1, ref1), "mismatch vs reference (small case)"

    # Multi-grid-step case (bt = 8, even step count -> megacore friendly).
    x2 = jax.random.normal(k2, (16, 4, 40), dtype=jnp.float32)
    out2 = jax.block_until_ready(patch_extractor(x2, patch_size))
    ref2 = patch_extractor_ref(x2, patch_size)
    assert out2.shape == (16, 4, 40)
    assert out2.dtype == x2.dtype
    assert jnp.array_equal(out2, ref2), "mismatch vs reference (tiled case)"

    print("KERNEL_OK")
</pallas_src>

<mosaic_0001>
module attributes {stable_mosaic.version = 11 : i64} {
  func.func @kernel(%arg0: i32, %arg1: memref<2x160xf32, #tpu.memory_space<vmem>>, %arg2: memref<2x160xf32, #tpu.memory_space<vmem>>) attributes {dimension_semantics = [#tpu.dimension_semantics<parallel>], iteration_bounds = array<i64: 1>, scalar_prefetch = 0 : i64, scratch_operands = 0 : i64, tpu.core_type = #tpu.core_type<tc>, window_params = [{transform_indices = @transform_0, window_bounds = array<i64: 2, 160>}, {transform_indices = @transform_1, window_bounds = array<i64: 2, 160>}]} {
    %c0 = arith.constant 0 : index
    %c0_0 = arith.constant 0 : index
    %0 = vector.load %arg1[%c0, %c0_0] : memref<2x160xf32, #tpu.memory_space<vmem>>, vector<2x10xf32>
    %c0_1 = arith.constant 0 : index
    %c0_2 = arith.constant 0 : index
    %1 = vector.load %arg2[%c0_1, %c0_2] : memref<2x160xf32, #tpu.memory_space<vmem>>, vector<2x10xf32>
    tpu.vector_store %arg2[%c0_1, %c0_2], %0 {strides = array<i32>} : memref<2x160xf32, #tpu.memory_space<vmem>>, vector<2x10xf32>,
    %c0_3 = arith.constant 0 : index
    %c40 = arith.constant 40 : index
    %2 = vector.load %arg1[%c0_3, %c40] : memref<2x160xf32, #tpu.memory_space<vmem>>, vector<2x10xf32>
    %c0_4 = arith.constant 0 : index
    %c10 = arith.constant 10 : index
    %3 = vector.load %arg2[%c0_4, %c10] : memref<2x160xf32, #tpu.memory_space<vmem>>, vector<2x10xf32>
    tpu.vector_store %arg2[%c0_4, %c10], %2 {strides = array<i32>} : memref<2x160xf32, #tpu.memory_space<vmem>>, vector<2x10xf32>,
    %c0_5 = arith.constant 0 : index
    %c80 = arith.constant 80 : index
    %4 = vector.load %arg1[%c0_5, %c80] : memref<2x160xf32, #tpu.memory_space<vmem>>, vector<2x10xf32>
    %c0_6 = arith.constant 0 : index
    %c20 = arith.constant 20 : index
    %5 = vector.load %arg2[%c0_6, %c20] : memref<2x160xf32, #tpu.memory_space<vmem>>, vector<2x10xf32>
    tpu.vector_store %arg2[%c0_6, %c20], %4 {strides = array<i32>} : memref<2x160xf32, #tpu.memory_space<vmem>>, vector<2x10xf32>,
    %c0_7 = arith.constant 0 : index
    %c120 = arith.constant 120 : index
    %6 = vector.load %arg1[%c0_7, %c120] : memref<2x160xf32, #tpu.memory_space<vmem>>, vector<2x10xf32>
    %c0_8 = arith.constant 0 : index
    %c30 = arith.constant 30 : index
    %7 = vector.load %arg2[%c0_8, %c30] : memref<2x160xf32, #tpu.memory_space<vmem>>, vector<2x10xf32>
    tpu.vector_store %arg2[%c0_8, %c30], %6 {strides = array<i32>} : memref<2x160xf32, #tpu.memory_space<vmem>>, vector<2x10xf32>,
    %c0_9 = arith.constant 0 : index
    %c10_10 = arith.constant 10 : index
    %8 = vector.load %arg1[%c0_9, %c10_10] : memref<2x160xf32, #tpu.memory_space<vmem>>, vector<2x10xf32>
    %c0_11 = arith.constant 0 : index
    %c40_12 = arith.constant 40 : index
    %9 = vector.load %arg2[%c0_11, %c40_12] : memref<2x160xf32, #tpu.memory_space<vmem>>, vector<2x10xf32>
    tpu.vector_store %arg2[%c0_11, %c40_12], %8 {strides = array<i32>} : memref<2x160xf32, #tpu.memory_space<vmem>>, vector<2x10xf32>,
    %c0_13 = arith.constant 0 : index
    %c50 = arith.constant 50 : index
    %10 = vector.load %arg1[%c0_13, %c50] : memref<2x160xf32, #tpu.memory_space<vmem>>, vector<2x10xf32>
    %c0_14 = arith.constant 0 : index
    %c50_15 = arith.constant 50 : index
    %11 = vector.load %arg2[%c0_14, %c50_15] : memref<2x160xf32, #tpu.memory_space<vmem>>, vector<2x10xf32>
    tpu.vector_store %arg2[%c0_14, %c50_15], %10 {strides = array<i32>} : memref<2x160xf32, #tpu.memory_space<vmem>>, vector<2x10xf32>,
    %c0_16 = arith.constant 0 : index
    %c90 = arith.constant 90 : index
    %12 = vector.load %arg1[%c0_16, %c90] : memref<2x160xf32, #tpu.memory_space<vmem>>, vector<2x10xf32>
    %c0_17 = arith.constant 0 : index
    %c60 = arith.constant 60 : index
    %13 = vector.load %arg2[%c0_17, %c60] : memref<2x160xf32, #tpu.memory_space<vmem>>, vector<2x10xf32>
    tpu.vector_store %arg2[%c0_17, %c60], %12 {strides = array<i32>} : memref<2x160xf32, #tpu.memory_space<vmem>>, vector<2x10xf32>,
    %c0_18 = arith.constant 0 : index
    %c130 = arith.constant 130 : index
    %14 = vector.load %arg1[%c0_18, %c130] : memref<2x160xf32, #tpu.memory_space<vmem>>, vector<2x10xf32>
    %c0_19 = arith.constant 0 : index
    %c70 = arith.constant 70 : index
    %15 = vector.load %arg2[%c0_19, %c70] : memref<2x160xf32, #tpu.memory_space<vmem>>, vector<2x10xf32>
    tpu.vector_store %arg2[%c0_19, %c70], %14 {strides = array<i32>} : memref<2x160xf32, #tpu.memory_space<vmem>>, vector<2x10xf32>,
    %c0_20 = arith.constant 0 : index
    %c20_21 = arith.constant 20 : index
    %16 = vector.load %arg1[%c0_20, %c20_21] : memref<2x160xf32, #tpu.memory_space<vmem>>, vector<2x10xf32>
    %c0_22 = arith.constant 0 : index
    %c80_23 = arith.constant 80 : index
    %17 = vector.load %arg2[%c0_22, %c80_23] : memref<2x160xf32, #tpu.memory_space<vmem>>, vector<2x10xf32>
    tpu.vector_store %arg2[%c0_22, %c80_23], %16 {strides = array<i32>} : memref<2x160xf32, #tpu.memory_space<vmem>>, vector<2x10xf32>,
    %c0_24 = arith.constant 0 : index
    %c60_25 = arith.constant 60 : index
    %18 = vector.load %arg1[%c0_24, %c60_25] : memref<2x160xf32, #tpu.memory_space<vmem>>, vector<2x10xf32>
    %c0_26 = arith.constant 0 : index
    %c90_27 = arith.constant 90 : index
    %19 = vector.load %arg2[%c0_26, %c90_27] : memref<2x160xf32, #tpu.memory_space<vmem>>, vector<2x10xf32>
    tpu.vector_store %arg2[%c0_26, %c90_27], %18 {strides = array<i32>} : memref<2x160xf32, #tpu.memory_space<vmem>>, vector<2x10xf32>,
    %c0_28 = arith.constant 0 : index
    %c100 = arith.constant 100 : index
    %20 = vector.load %arg1[%c0_28, %c100] : memref<2x160xf32, #tpu.memory_space<vmem>>, vector<2x10xf32>
    %c0_29 = arith.constant 0 : index
    %c100_30 = arith.constant 100 : index
    %21 = vector.load %arg2[%c0_29, %c100_30] : memref<2x160xf32, #tpu.memory_space<vmem>>, vector<2x10xf32>
    tpu.vector_store %arg2[%c0_29, %c100_30], %20 {strides = array<i32>} : memref<2x160xf32, #tpu.memory_space<vmem>>, vector<2x10xf32>,
    %c0_31 = arith.constant 0 : index
    %c140 = arith.constant 140 : index
    %22 = vector.load %arg1[%c0_31, %c140] : memref<2x160xf32, #tpu.memory_space<vmem>>, vector<2x10xf32>
    %c0_32 = arith.constant 0 : index
    %c110 = arith.constant 110 : index
    %23 = vector.load %arg2[%c0_32, %c110] : memref<2x160xf32, #tpu.memory_space<vmem>>, vector<2x10xf32>
    tpu.vector_store %arg2[%c0_32, %c110], %22 {strides = array<i32>} : memref<2x160xf32, #tpu.memory_space<vmem>>, vector<2x10xf32>,
    %c0_33 = arith.constant 0 : index
    %c30_34 = arith.constant 30 : index
    %24 = vector.load %arg1[%c0_33, %c30_34] : memref<2x160xf32, #tpu.memory_space<vmem>>, vector<2x10xf32>
    %c0_35 = arith.constant 0 : index
    %c120_36 = arith.constant 120 : index
    %25 = vector.load %arg2[%c0_35, %c120_36] : memref<2x160xf32, #tpu.memory_space<vmem>>, vector<2x10xf32>
    tpu.vector_store %arg2[%c0_35, %c120_36], %24 {strides = array<i32>} : memref<2x160xf32, #tpu.memory_space<vmem>>, vector<2x10xf32>,
    %c0_37 = arith.constant 0 : index
    %c70_38 = arith.constant 70 : index
    %26 = vector.load %arg1[%c0_37, %c70_38] : memref<2x160xf32, #tpu.memory_space<vmem>>, vector<2x10xf32>
    %c0_39 = arith.constant 0 : index
    %c130_40 = arith.constant 130 : index
    %27 = vector.load %arg2[%c0_39, %c130_40] : memref<2x160xf32, #tpu.memory_space<vmem>>, vector<2x10xf32>
    tpu.vector_store %arg2[%c0_39, %c130_40], %26 {strides = array<i32>} : memref<2x160xf32, #tpu.memory_space<vmem>>, vector<2x10xf32>,
    %c0_41 = arith.constant 0 : index
    %c110_42 = arith.constant 110 : index
    %28 = vector.load %arg1[%c0_41, %c110_42] : memref<2x160xf32, #tpu.memory_space<vmem>>, vector<2x10xf32>
    %c0_43 = arith.constant 0 : index
    %c140_44 = arith.constant 140 : index
    %29 = vector.load %arg2[%c0_43, %c140_44] : memref<2x160xf32, #tpu.memory_space<vmem>>, vector<2x10xf32>
    tpu.vector_store %arg2[%c0_43, %c140_44], %28 {strides = array<i32>} : memref<2x160xf32, #tpu.memory_space<vmem>>, vector<2x10xf32>,
    %c0_45 = arith.constant 0 : index
    %c150 = arith.constant 150 : index
    %30 = vector.load %arg1[%c0_45, %c150] : memref<2x160xf32, #tpu.memory_space<vmem>>, vector<2x10xf32>
    %c0_46 = arith.constant 0 : index
    %c150_47 = arith.constant 150 : index
    %31 = vector.load %arg2[%c0_46, %c150_47] : memref<2x160xf32, #tpu.memory_space<vmem>>, vector<2x10xf32>
    tpu.vector_store %arg2[%c0_46, %c150_47], %30 {strides = array<i32>} : memref<2x160xf32, #tpu.memory_space<vmem>>, vector<2x10xf32>,
    return
  }
  func.func @transform_0(%arg0: i32) -> (i32, i32) {
    %c0_i32 = arith.constant 0 : i32
    %c0_i32_0 = arith.constant 0 : i32
    return %arg0, %c0_i32 : i32, i32
  }
  func.func @transform_1(%arg0: i32) -> (i32, i32) {
    %c0_i32 = arith.constant 0 : i32
    %c0_i32_0 = arith.constant 0 : i32
    return %arg0, %c0_i32 : i32, i32
  }
}

</mosaic_0001>

<llo_original>
// kernel: tpu_custom_call.1
$region0: #{tpu_custom_call.1}
  #allocation0 [shape = 'u32[]', space=smem, size = 0x4, offset = 0x4, fixed_abs, tag = 'smem constant byte address 0x4 - core index']
  #allocation1 [shape = 'u32[144,128]{1,0:T(1,128)}', space=vmem, size = 0x12000, scoped, tag = 'internal scratch']
  %s0 = inlined_call_operand.hbm [shape: f32[2,160], index: 0, kind: input, shape index: {}]
  %s1 = inlined_call_operand.hbm [shape: f32[2,160], index: 1, kind: output, shape index: {}]
  %s2 = sld [smem:[#allocation0]]
  $region18: #{tpu_custom_call.1} parent=0
    _
  %s4 = ssub.s32 1, %s2
  %s5 = scalar_select 0, %s4, %s2
  $region1: #{tpu_custom_call.1} parent=0
    #allocation2 [shape = 'u8[2048]{0}', space=vmem, size = 0x800, scoped, tag = 'input window, operand 0, single buffered']
    #allocation3 [shape = 's32[1]{0}', space=sflag, size = 0x4, scoped, tag = 'scoped memory for tpu_custom_call.1']
    #allocation4 [shape = 's32[1]{0}', space=sflag, size = 0x4, scoped, tag = 'scoped memory for tpu_custom_call.1']
    #allocation5 [shape = 'u8[2048]{0}', space=vmem, size = 0x800, scoped, tag = 'output window, operand 0, single buffered']
    %6 = vsyncpa [#allocation3], 0
    %7 = vsyncpa [#allocation4], 0
    // Predicated region
    $region2: #{tpu_custom_call.1} parent=1 // pred_check
      _
    $region3: #{tpu_custom_call.1} parent=1 // pred_check_branch
      %9 = sbr.rel (0) target = $region5
    $region4: #{tpu_custom_call.1} parent=1 // pred_region
      %s11 = ssub.s32 64, 64
      %12 = vsyncadd [#allocation3], %s11
      %s14 = sshll.u32 [#allocation2], 4
      %s15 = int_to_ptr.vmem [resolvable:$true] %s14
      %17 = dma.hbm_to_vmem [thread:$0]  %s0, 64, %s15, [#allocation3]
    $region5: #{tpu_custom_call.1} parent=1 // pred_fallthru
      _
    // Predicated region
    $region6: #{tpu_custom_call.1} parent=1 // pred_check
      _
    $region7: #{tpu_custom_call.1} parent=1 // pred_check_branch
      %19 = sbr.rel (0) target = $region9
    $region8: #{tpu_custom_call.1} parent=1 // pred_region
      %20 = dma.done [#allocation3], 64
    $region9: #{tpu_custom_call.1} parent=1 // pred_fallthru
      _
    %v21 = vld [vmem:[#allocation2] sm:$0x3]
    %vm22 = vcmask 74752
    %23 = vst.msk [vmem:[#allocation5] sm:$0x3] %vm22, %v21
    %v24 = vld [vmem:[#allocation2] sm:$0x3]
    %26 = vrot.lane.b32.xlu0 %v24, 98
    %v27 = vpop.permute.xlu0 %26
    %vm29 = vcmask 156752
    %30 = vst.msk [vmem:[#allocation5] sm:$0x3] %vm29, %v27
    %v31 = vld [vmem:[#allocation2] sm:$0x3]
    %33 = vrot.lane.b32.xlu0 %v31, 68
    %v34 = vpop.permute.xlu0 %33
    %vm36 = vcmask 238752
    %37 = vst.msk [vmem:[#allocation5] sm:$0x3] %vm36, %v34
    %v38 = vld [vmem:[#allocation2] sm:$0xf]
    %40 = vrot.lane.b32.xlu0 %v38, 38
    %v41 = vpop.permute.xlu0 %40
    %v42 = vrot.slane %v41, 2
    %vm43 = vcmask 310272
    %v44 = vsel %vm43, %v41, %v42
    %vm46 = vcmask 320752
    %47 = vst.msk [vmem:[#allocation5] sm:$0x3] %vm46, %v44
    %v48 = vld [vmem:[#allocation2] sm:$0x3]
    %50 = vrot.lane.b32.xlu0 %v48, 30
    %v51 = vpop.permute.xlu0 %50
    %vm53 = vcmask 402752
    %54 = vst.msk [vmem:[#allocation5] sm:$0x3] %vm53, %v51
    %v55 = vld [vmem:[#allocation2] sm:$0x3]
    %vm56 = vcmask 484752
    %57 = vst.msk [vmem:[#allocation5] sm:$0x3] %vm56, %v55
    %v58 = vld [vmem:[#allocation2] sm:$0x3]
    %60 = vrot.lane.b32.xlu0 %v58, 98
    %v61 = vpop.permute.xlu0 %60
    %vm63 = vcmask 566752
    %64 = vst.msk [vmem:[#allocation5] sm:$0x3] %vm63, %v61
    %v65 = vld [vmem:[#allocation2 + $0x2] sm:$0x3]
    %67 = vrot.lane.b32.xlu0 %v65, 68
    %v68 = vpop.permute.xlu0 %67
    %vm70 = vcmask 648752
    %71 = vst.msk [vmem:[#allocation5] sm:$0x3] %vm70, %v68
    %v72 = vld [vmem:[#allocation2] sm:$0x3]
    %74 = vrot.lane.b32.xlu0 %v72, 60
    %v75 = vpop.permute.xlu0 %74
    %vm77 = vcmask 730752
    %78 = vst.msk [vmem:[#allocation5] sm:$0x3] %vm77, %v75
    %v79 = vld [vmem:[#allocation2] sm:$0x3]
    %81 = vrot.lane.b32.xlu0 %v79, 30
    %v82 = vpop.permute.xlu0 %81
    %vm84 = vcmask 812752
    %85 = vst.msk [vmem:[#allocation5] sm:$0x3] %vm84, %v82
    %v86 = vld [vmem:[#allocation2] sm:$0x3]
    %vm87 = vcmask 894752
    %88 = vst.msk [vmem:[#allocation5] sm:$0x3] %vm87, %v86
    %v89 = vld [vmem:[#allocation2 + $0x2] sm:$0x3]
    %91 = vrot.lane.b32.xlu0 %v89, 98
    %v92 = vpop.permute.xlu0 %91
    %vm94 = vcmask 976752
    %95 = vst.msk [vmem:[#allocation5] sm:$0x3] %vm94, %v92
    %v96 = vld [vmem:[#allocation2] sm:$0x3]
    %98 = vrot.lane.b32.xlu0 %v96, 90
    %v99 = vpop.permute.xlu0 %98
    %v100 = vrot.slane %v99, 6
    %vm101 = vcmask 736256
    %v102 = vsel %vm101, %v100, %v99
    %vm104 = vcmask 1042368
    %vm105 = vcmask 11266
    %vm106 = vmor %vm105, %vm104
    %107 = vst.msk [vmem:[#allocation5] sm:$0xf] %vm106, %v102
    %v108 = vld [vmem:[#allocation2] sm:$0x3]
    %110 = vrot.lane.b32.xlu0 %v108, 60
    %v111 = vpop.permute.xlu0 %110
    %vm113 = vcmask 91152
    %114 = vst.msk [vmem:[#allocation5 + $0x2] sm:$0x3] %vm113, %v111
    %v115 = vld [vmem:[#allocation2] sm:$0x3]
    %117 = vrot.lane.b32.xlu0 %v115, 30
    %v118 = vpop.permute.xlu0 %117
    %vm120 = vcmask 173152
    %121 = vst.msk [vmem:[#allocation5 + $0x2] sm:$0x3] %vm120, %v118
    %v122 = vld [vmem:[#allocation2 + $0x2] sm:$0x3]
    %vm123 = vcmask 255152
    %124 = vst.msk [vmem:[#allocation5 + $0x2] sm:$0x3] %vm123, %v122
    // Predicated region
    $region10: #{tpu_custom_call.1} parent=1 // pred_check
      _
    $region11: #{tpu_custom_call.1} parent=1 // pred_check_branch
      %126 = sbr.rel (0) target = $region13
    $region12: #{tpu_custom_call.1} parent=1 // pred_region
      %s128 = ssub.s32 64, 64
      %129 = vsyncadd [#allocation4], %s128
      %s131 = sshll.u32 [#allocation5], 4
      %s132 = int_to_ptr.vmem [resolvable:$true] %s131
      %134 = dma.vmem_to_hbm [thread:$0]  %s132, 64, %s1, [#allocation4]
    $region13: #{tpu_custom_call.1} parent=1 // pred_fallthru
      _
    // Predicated region
    $region14: #{tpu_custom_call.1} parent=1 // pred_check
      _
    $region15: #{tpu_custom_call.1} parent=1 // pred_check_branch
      %136 = sbr.rel (0) target = $region17
    $region16: #{tpu_custom_call.1} parent=1 // pred_region
      %137 = dma.done [#allocation4], 64
    $region17: #{tpu_custom_call.1} parent=1 // pred_fallthru
      _
    %138 = vsyncpa [#allocation3], 1
    %139 = vsyncpa [#allocation4], 1

</llo_original>
